<compile_context>
chip_gen: v7x
topology: tpu7x:2x2x1
jax: 0.10.0
libtpu: 0.0.40
codegen_flags: <defaults>
</compile_context>

<pallas_src>
import jax
import jax.numpy as jnp
from jax.experimental import pallas as pl
from jax.experimental.pallas import tpu as pltpu


_HIDDEN_PAD = 128   # pad hidden dim to a full 128-lane tile
_TILE_B = 2048      # batch tile (multiple of 8); sized for all of v5e/v6e/v7x


def _cost_critic_kernel(x_ref, w1_ref, b1_ref, w2_ref, b2_ref, w3_ref, b3_ref,
                        o_ref):
    # bf16 operands to the MXU, f32 accumulation; elementwise math in f32.
    x = x_ref[...].astype(jnp.bfloat16)

    # Layer 1: Linear + ReLU
    h1 = jnp.dot(x, w1_ref[...], preferred_element_type=jnp.float32) + b1_ref[...]
    h1 = jnp.maximum(h1, 0.0)

    # Layer 2: Linear + ReLU
    h2 = jnp.dot(h1.astype(jnp.bfloat16), w2_ref[...],
                 preferred_element_type=jnp.float32) + b2_ref[...]
    h2 = jnp.maximum(h2, 0.0)

    # Layer 3: H -> 1 projection as VPU multiply + XLU lane reduce
    # (keeps the single-output-lane matmul off the MXU). w3 is a (1, H) row,
    # b3 is a scalar in SMEM.
    out = jnp.sum(h2 * w3_ref[...], axis=-1, keepdims=True) + b3_ref[0]
    o_ref[...] = out.astype(o_ref.dtype)


def pack_params(params, hidden_pad=_HIDDEN_PAD):
    """Zero-pad hidden dim to `hidden_pad` lanes; bf16 matmul weights, f32 rest."""
    w1, b1 = params["w1"], params["b1"]
    w2, b2 = params["w2"], params["b2"]
    w3, b3 = params["w3"], params["b3"]
    s, h = w1.shape
    assert hidden_pad >= h
    ph = hidden_pad - h
    w1p = jnp.pad(w1, ((0, 0), (0, ph))).astype(jnp.bfloat16)               # (S, Hp)
    b1p = jnp.pad(b1.reshape(1, h), ((0, 0), (0, ph))).astype(jnp.float32)  # (1, Hp)
    w2p = jnp.pad(w2, ((0, ph), (0, ph))).astype(jnp.bfloat16)              # (Hp, Hp)
    b2p = jnp.pad(b2.reshape(1, h), ((0, 0), (0, ph))).astype(jnp.float32)  # (1, Hp)
    w3p = jnp.pad(w3.reshape(1, h), ((0, 0), (0, ph))).astype(jnp.float32)  # (1, Hp) row
    b3p = b3.reshape(1).astype(jnp.float32)                                 # (1,) SMEM scalar
    return w1p, b1p, w2p, b2p, w3p, b3p


def cost_critic_forward(state, params, *, tile_b=_TILE_B):
    """Fused CostCritic MLP forward: (B, S) f32 -> (B, 1) f32."""
    B, S = state.shape
    H = params["w1"].shape[1]
    w1p, b1p, w2p, b2p, w3p, b3p = pack_params(params)
    Hp = w1p.shape[1]

    # Batch tile: large to amortize per-grid-step overhead, but never bigger
    # than (the 8-rounded) batch itself.
    tile_b = max(8, min(tile_b, ((B + 7) // 8) * 8))
    n_tiles = pl.cdiv(B, tile_b)
    b_pad = n_tiles * tile_b
    if b_pad != B:
        state = jnp.pad(state, ((0, b_pad - B), (0, 0)))

    flops = 2 * B * (S * H + H * H + H)
    bytes_accessed = (b_pad * S * 4            # streamed state
                      + w1p.size * 2 + w2p.size * 2
                      + (b1p.size + b2p.size + w3p.size + b3p.size) * 4
                      + b_pad * 4)             # output

    out = pl.pallas_call(
        _cost_critic_kernel,
        out_shape=jax.ShapeDtypeStruct((b_pad, 1), jnp.float32),
        grid=(n_tiles,),
        in_specs=[
            pl.BlockSpec((tile_b, S), lambda i: (i, 0)),        # state: streamed
            pl.BlockSpec((S, Hp), lambda i: (0, 0)),            # w1: VMEM-resident
            pl.BlockSpec((1, Hp), lambda i: (0, 0)),            # b1
            pl.BlockSpec((Hp, Hp), lambda i: (0, 0)),           # w2
            pl.BlockSpec((1, Hp), lambda i: (0, 0)),            # b2
            pl.BlockSpec((1, Hp), lambda i: (0, 0)),            # w3 (row)
            pl.BlockSpec(memory_space=pltpu.MemorySpace.SMEM),  # b3 scalar
        ],
        out_specs=pl.BlockSpec((tile_b, 1), lambda i: (i, 0)),
        compiler_params=pltpu.CompilerParams(
            dimension_semantics=("parallel",)),
        cost_estimate=pl.CostEstimate(flops=flops, transcendentals=0,
                                      bytes_accessed=bytes_accessed),
    )(state, w1p, b1p, w2p, b2p, w3p, b3p)
    return out[:B]


def init_params(key, state_dim, hidden_dim=64):
    """Deterministic init mimicking nn.Linear's uniform(-1/sqrt(fan_in), +)."""
    ks = jax.random.split(key, 6)

    def lin(kw, kb, fan_in, fan_out):
        bound = 1.0 / jnp.sqrt(jnp.float32(fan_in))
        w = jax.random.uniform(kw, (fan_in, fan_out), jnp.float32, -bound, bound)
        b = jax.random.uniform(kb, (fan_out,), jnp.float32, -bound, bound)
        return w, b

    w1, b1 = lin(ks[0], ks[1], state_dim, hidden_dim)
    w2, b2 = lin(ks[2], ks[3], hidden_dim, hidden_dim)
    w3, b3 = lin(ks[4], ks[5], hidden_dim, 1)
    return dict(w1=w1, b1=b1, w2=w2, b2=b2, w3=w3, b3=b3)


def reference_forward(state, p):
    h1 = jnp.maximum(state @ p["w1"] + p["b1"], 0.0)
    h2 = jnp.maximum(h1 @ p["w2"] + p["b2"], 0.0)
    return h2 @ p["w3"] + p["b3"]


if __name__ == "__main__":
    key = jax.random.PRNGKey(0)
    k_param, k_state = jax.random.split(key)

    batch = 32
    state_dim = 16
    hidden_dim = 64

    params = init_params(k_param, state_dim, hidden_dim)
    state = jax.random.normal(k_state, (batch, state_dim), dtype=jnp.float32)

    cost = cost_critic_forward(state, params)
    cost = jax.block_until_ready(cost)

    ref = reference_forward(state, params)
    assert cost.shape == (batch, 1)
    # bf16 MXU operands (f32 accumulation) -> small tolerance vs pure-f32 ref.
    assert jnp.allclose(cost, ref, atol=5e-2, rtol=5e-2), (
        float(jnp.max(jnp.abs(cost - ref))))

    print("KERNEL_OK")
</pallas_src>

<mosaic_0001>
module attributes {stable_mosaic.version = 11 : i64} {
  func.func @_cost_critic_kernel(%arg0: i32, %arg1: memref<32x16xf32, #tpu.memory_space<vmem>>, %arg2: memref<16x128xbf16, #tpu.memory_space<vmem>>, %arg3: memref<1x128xf32, #tpu.memory_space<vmem>>, %arg4: memref<128x128xbf16, #tpu.memory_space<vmem>>, %arg5: memref<1x128xf32, #tpu.memory_space<vmem>>, %arg6: memref<1x128xf32, #tpu.memory_space<vmem>>, %arg7: memref<1xf32, #tpu.memory_space<smem>>, %arg8: memref<32x1xf32, #tpu.memory_space<vmem>>) attributes {dimension_semantics = [#tpu.dimension_semantics<parallel>], iteration_bounds = array<i64: 1>, scalar_prefetch = 0 : i64, scratch_operands = 0 : i64, tpu.core_type = #tpu.core_type<tc>, window_params = [{transform_indices = @transform_0, window_bounds = array<i64: 32, 16>}, {pipeline_mode = #tpu.pipeline_mode<synchronous>, transform_indices = @transform_1, window_bounds = array<i64: 16, 128>}, {pipeline_mode = #tpu.pipeline_mode<synchronous>, transform_indices = @transform_2, window_bounds = array<i64: 1, 128>}, {pipeline_mode = #tpu.pipeline_mode<synchronous>, transform_indices = @transform_3, window_bounds = array<i64: 128, 128>}, {pipeline_mode = #tpu.pipeline_mode<synchronous>, transform_indices = @transform_4, window_bounds = array<i64: 1, 128>}, {pipeline_mode = #tpu.pipeline_mode<synchronous>, transform_indices = @transform_5, window_bounds = array<i64: 1, 128>}, {transform_indices = @transform_6, window_bounds = array<i64: 1>}, {transform_indices = @transform_7, window_bounds = array<i64: 32, 1>}]} {
    %c0 = arith.constant 0 : index
    %c0_0 = arith.constant 0 : index
    %0 = vector.load %arg1[%c0, %c0_0] : memref<32x16xf32, #tpu.memory_space<vmem>>, vector<32x16xf32>
    %1 = arith.truncf %0 : vector<32x16xf32> to vector<32x16xbf16>
    %c0_1 = arith.constant 0 : index
    %c0_2 = arith.constant 0 : index
    %2 = vector.load %arg2[%c0_1, %c0_2] : memref<16x128xbf16, #tpu.memory_space<vmem>>, vector<16x128xbf16>
    %cst = arith.constant dense<0.000000e+00> : vector<32x128xf32>
    %3 = tpu.matmul %1, %2, %cst {dimension_numbers = #tpu.dot_dimension_numbers<[1], [0], [0], [1], [0, 0, 1, 1], [], []>} : vector<32x16xbf16>, vector<16x128xbf16>, vector<32x128xf32> -> vector<32x128xf32>
    %c0_3 = arith.constant 0 : index
    %c0_4 = arith.constant 0 : index
    %4 = vector.load %arg3[%c0_3, %c0_4] : memref<1x128xf32, #tpu.memory_space<vmem>>, vector<1x128xf32>
    %5 = vector.broadcast %4 : vector<1x128xf32> to vector<32x128xf32>
    %6 = arith.addf %3, %5 : vector<32x128xf32>
    %cst_5 = arith.constant 0.000000e+00 : f32
    %7 = vector.broadcast %cst_5 : f32 to vector<32x128xf32>
    %8 = arith.maximumf %6, %7 : vector<32x128xf32>
    %9 = arith.truncf %8 : vector<32x128xf32> to vector<32x128xbf16>
    %c0_6 = arith.constant 0 : index
    %c0_7 = arith.constant 0 : index
    %10 = vector.load %arg4[%c0_6, %c0_7] : memref<128x128xbf16, #tpu.memory_space<vmem>>, vector<128x128xbf16>
    %cst_8 = arith.constant dense<0.000000e+00> : vector<32x128xf32>
    %11 = tpu.matmul %9, %10, %cst_8 {dimension_numbers = #tpu.dot_dimension_numbers<[1], [0], [0], [1], [0, 0, 1, 1], [], []>} : vector<32x128xbf16>, vector<128x128xbf16>, vector<32x128xf32> -> vector<32x128xf32>
    %c0_9 = arith.constant 0 : index
    %c0_10 = arith.constant 0 : index
    %12 = vector.load %arg5[%c0_9, %c0_10] : memref<1x128xf32, #tpu.memory_space<vmem>>, vector<1x128xf32>
    %13 = vector.broadcast %12 : vector<1x128xf32> to vector<32x128xf32>
    %14 = arith.addf %11, %13 : vector<32x128xf32>
    %cst_11 = arith.constant 0.000000e+00 : f32
    %15 = vector.broadcast %cst_11 : f32 to vector<32x128xf32>
    %16 = arith.maximumf %14, %15 : vector<32x128xf32>
    %c0_12 = arith.constant 0 : index
    %c0_13 = arith.constant 0 : index
    %17 = vector.load %arg6[%c0_12, %c0_13] : memref<1x128xf32, #tpu.memory_space<vmem>>, vector<1x128xf32>
    %18 = vector.broadcast %17 : vector<1x128xf32> to vector<32x128xf32>
    %19 = arith.mulf %16, %18 : vector<32x128xf32>
    %cst_14 = arith.constant dense<0.000000e+00> : vector<32xf32>
    %20 = vector.multi_reduction <add>, %19, %cst_14 [1] : vector<32x128xf32> to vector<32xf32>
    %21 = vector.shape_cast %20 : vector<32xf32> to vector<32x1xf32>
    %c0_15 = arith.constant 0 : index
    %22 = memref.load %arg7[%c0_15] : memref<1xf32, #tpu.memory_space<smem>>
    %23 = vector.broadcast %22 : f32 to vector<32x1xf32>
    %24 = arith.addf %21, %23 : vector<32x1xf32>
    %c0_16 = arith.constant 0 : index
    %c0_17 = arith.constant 0 : index
    %25 = vector.load %arg8[%c0_16, %c0_17] : memref<32x1xf32, #tpu.memory_space<vmem>>, vector<32x1xf32>
    tpu.vector_store %arg8[%c0_16, %c0_17], %24 {strides = array<i32>} : memref<32x1xf32, #tpu.memory_space<vmem>>, vector<32x1xf32>,
    return
  }
  func.func @transform_0(%arg0: i32) -> (i32, i32) {
    %c0_i32 = arith.constant 0 : i32
    %c0_i32_0 = arith.constant 0 : i32
    return %arg0, %c0_i32 : i32, i32
  }
  func.func @transform_1(%arg0: i32) -> (i32, i32) {
    %c0_i32 = arith.constant 0 : i32
    %c0_i32_0 = arith.constant 0 : i32
    %c0_i32_1 = arith.constant 0 : i32
    return %c0_i32, %c0_i32_0 : i32, i32
  }
  func.func @transform_2(%arg0: i32) -> (i32, i32) {
    %c0_i32 = arith.constant 0 : i32
    %c0_i32_0 = arith.constant 0 : i32
    %c0_i32_1 = arith.constant 0 : i32
    return %c0_i32, %c0_i32_0 : i32, i32
  }
  func.func @transform_3(%arg0: i32) -> (i32, i32) {
    %c0_i32 = arith.constant 0 : i32
    %c0_i32_0 = arith.constant 0 : i32
    %c0_i32_1 = arith.constant 0 : i32
    return %c0_i32, %c0_i32_0 : i32, i32
  }
  func.func @transform_4(%arg0: i32) -> (i32, i32) {
    %c0_i32 = arith.constant 0 : i32
    %c0_i32_0 = arith.constant 0 : i32
    %c0_i32_1 = arith.constant 0 : i32
    return %c0_i32, %c0_i32_0 : i32, i32
  }
  func.func @transform_5(%arg0: i32) -> (i32, i32) {
    %c0_i32 = arith.constant 0 : i32
    %c0_i32_0 = arith.constant 0 : i32
    %c0_i32_1 = arith.constant 0 : i32
    return %c0_i32, %c0_i32_0 : i32, i32
  }
  func.func @transform_6(%arg0: i32) -> i32 {
    %c0_i32 = arith.constant 0 : i32
    %c0_i32_0 = arith.constant 0 : i32
    return %c0_i32 : i32
  }
  func.func @transform_7(%arg0: i32) -> (i32, i32) {
    %c0_i32 = arith.constant 0 : i32
    %c0_i32_0 = arith.constant 0 : i32
    return %arg0, %c0_i32 : i32, i32
  }
}

</mosaic_0001>

<llo_original>
// kernel: tpu_custom_call.1
$region0: #{tpu_custom_call.1}
  #allocation0 [shape = 'u32[]', space=smem, size = 0x4, offset = 0x4, fixed_abs, tag = 'smem constant byte address 0x4 - core index']
  #allocation1 [shape = 'u32[144,128]{1,0:T(1,128)}', space=vmem, size = 0x12000, scoped, tag = 'internal scratch']
  #allocation2 [shape = 'f32[1]{0:T(128)S(6)}', space=smem, size = 0x200, scoped, tag = 'scoped memory for tpu_custom_call.1']
  %s0 = inlined_call_operand.vmem [shape: f32[32,16], index: 0, kind: input, shape index: {}]
  %s1 = inlined_call_operand.vmem [shape: bf16[16,128], index: 1, kind: input, shape index: {}]
  %s2 = inlined_call_operand.vmem [shape: f32[1,128], index: 2, kind: input, shape index: {}]
  %s3 = inlined_call_operand.hbm [shape: bf16[128,128], index: 3, kind: input, shape index: {}]
  %s4 = inlined_call_operand.vmem [shape: f32[1,128], index: 4, kind: input, shape index: {}]
  %s5 = inlined_call_operand.vmem [shape: f32[1,128], index: 5, kind: input, shape index: {}]
  %s6 = inlined_call_operand.<no memory space> [shape: f32[1], index: 6, kind: input, shape index: {}]
  %s7 = inlined_call_operand.vmem [shape: f32[32,1], index: 7, kind: output, shape index: {}]
  %s8 = sld [smem:[#allocation0]]
  $region42: #{tpu_custom_call.1} parent=0
    _
  %s10 = ssub.s32 1, %s8
  %s11 = scalar_select 0, %s10, %s8
  %12 = sst [smem:[#allocation2]] %s6
  $region1: #{tpu_custom_call.1} parent=0
    #allocation3 [shape = 'u8[32768]{0}', space=vmem, size = 0x8000, scoped, tag = 'input window, operand 3, single buffered']
    #allocation4 [shape = 's32[1]{0}', space=sflag, size = 0x4, scoped, tag = 'scoped memory for tpu_custom_call.1']
    %13 = vsyncpa [#allocation4], 0
    // Predicated region
    $region2: #{tpu_custom_call.1} parent=1 // pred_check
      _
    $region3: #{tpu_custom_call.1} parent=1 // pred_check_branch
      %15 = sbr.rel (0) target = $region5
    $region4: #{tpu_custom_call.1} parent=1 // pred_region
      _
    $region5: #{tpu_custom_call.1} parent=1 // pred_fallthru
      _
    // Predicated region
    $region6: #{tpu_custom_call.1} parent=1 // pred_check
      _
    $region7: #{tpu_custom_call.1} parent=1 // pred_check_branch
      %17 = sbr.rel (0) target = $region9
    $region8: #{tpu_custom_call.1} parent=1 // pred_region
      _
    $region9: #{tpu_custom_call.1} parent=1 // pred_fallthru
      _
    // Predicated region
    $region10: #{tpu_custom_call.1} parent=1 // pred_check
      _
    $region11: #{tpu_custom_call.1} parent=1 // pred_check_branch
      %19 = sbr.rel (0) target = $region13
    $region12: #{tpu_custom_call.1} parent=1 // pred_region
      _
    $region13: #{tpu_custom_call.1} parent=1 // pred_fallthru
      _
    // Predicated region
    $region14: #{tpu_custom_call.1} parent=1 // pred_check
      _
    $region15: #{tpu_custom_call.1} parent=1 // pred_check_branch
      %21 = sbr.rel (0) target = $region17
    $region16: #{tpu_custom_call.1} parent=1 // pred_region
      %s23 = ssub.s32 1024, 1024
      %24 = vsyncadd [#allocation4], %s23
      %s25 = sshll.u32 [#allocation3], 4
      %s26 = int_to_ptr.vmem [resolvable:$true] %s25
      %31 = dma.hbm_to_vmem [thread:$0]  %s3, 1024, %s26, [#allocation4], 64, 64, 4
    $region17: #{tpu_custom_call.1} parent=1 // pred_fallthru
      _
    // Predicated region
    $region18: #{tpu_custom_call.1} parent=1 // pred_check
      _
    $region19: #{tpu_custom_call.1} parent=1 // pred_check_branch
      %33 = sbr.rel (0) target = $region21
    $region20: #{tpu_custom_call.1} parent=1 // pred_region
      _
    $region21: #{tpu_custom_call.1} parent=1 // pred_fallthru
      _
    // Predicated region
    $region22: #{tpu_custom_call.1} parent=1 // pred_check
      _
    $region23: #{tpu_custom_call.1} parent=1 // pred_check_branch
      %35 = sbr.rel (0) target = $region25
    $region24: #{tpu_custom_call.1} parent=1 // pred_region
      _
    $region25: #{tpu_custom_call.1} parent=1 // pred_fallthru
      _
    // Predicated region
    $region26: #{tpu_custom_call.1} parent=1 // pred_check
      _
    $region27: #{tpu_custom_call.1} parent=1 // pred_check_branch
      %37 = sbr.rel (0) target = $region29
    $region28: #{tpu_custom_call.1} parent=1 // pred_region
      _
    $region29: #{tpu_custom_call.1} parent=1 // pred_fallthru
      _
    // Predicated region
    $region30: #{tpu_custom_call.1} parent=1 // pred_check
      _
    $region31: #{tpu_custom_call.1} parent=1 // pred_check_branch
      %39 = sbr.rel (0) target = $region33
    $region32: #{tpu_custom_call.1} parent=1 // pred_region
      %40 = dma.done [#allocation4], 1024
    $region33: #{tpu_custom_call.1} parent=1 // pred_fallthru
      _
    %v42 = vld [vmem:[%s0] sm:$0xff]
    %v43 = vld [vmem:[%s0 + $0x8] sm:$0xff]
    %v44 = vld [vmem:[%s0 + $0x10] sm:$0xff]
    %v45 = vld [vmem:[%s0 + $0x18] sm:$0xff]
    %v46 = vpack.c.bf16 %v43, %v42
    %v47 = vpack.c.bf16 %v45, %v44
    %v48 = vld [vmem:[%s1] sm:$0xf]
    %v49 = vld [vmem:[%s1 + $0x4] sm:$0xf]
    %v50 = vld [vmem:[%s2] sm:$0x1]
    %v52 = vlaneseq
    %v53 = vshrl.u32 %v52, 7
    %v54 = vsub.s32 0, %v53
    %v55 = vrot.slane %v50, %v54
    %v59 = vunpack.c.l.b16 %v48
    %v60 = vunpack.c.l.b16 %v49
    %v61 = vpack.c.b16 %v60, %v59
    %vm63 = vcmask 130048
    %v65 = vsel %vm63, %v46, 0
    %v68 = vsel %vm63, %v47, 0
    %70 = vmatprep.subr.bf16.mxu0 0
    %71 = vmatpush1.bf16.msra.mxu0 %v61
    %72 = vmatprep.subr.bf16.mxu0 0
    %73 = vmatpush1.bf16.msra.mxu0 0
    %74 = vmatprep.subr.bf16.mxu0 0
    %75 = vmatpush1.bf16.msra.mxu0 0
    %76 = vmatprep.subr.bf16.mxu0 0
    %77 = vmatpush1.bf16.msra.mxu0 0
    %78 = vmatprep.subr.bf16.mxu0 0
    %79 = vmatpush1.bf16.msra.mxu0 0
    %80 = vmatprep.subr.bf16.mxu0 0
    %81 = vmatpush1.bf16.msra.mxu0 0
    %82 = vmatprep.subr.bf16.mxu0 0
    %83 = vmatpush1.bf16.msra.mxu0 0
    %84 = vmatprep.subr.bf16.mxu0 0
    %85 = vmatpush1.bf16.msra.mxu0 0
    %86 = vmatprep.subr.bf16.mxu0 0
    %87 = vmatpush1.bf16.msra.mxu0 0
    %88 = vmatprep.subr.bf16.mxu0 0
    %89 = vmatpush1.bf16.msra.mxu0 0
    %90 = vmatprep.subr.bf16.mxu0 0
    %91 = vmatpush1.bf16.msra.mxu0 0
    %92 = vmatprep.subr.bf16.mxu0 0
    %93 = vmatpush1.bf16.msra.mxu0 0
    %94 = vmatprep.subr.bf16.mxu0 0
    %95 = vmatpush1.bf16.msra.mxu0 0
    %96 = vmatprep.subr.bf16.mxu0 0
    %97 = vmatpush1.bf16.msra.mxu0 0
    %98 = vmatprep.subr.bf16.mxu0 0
    %99 = vmatpush1.bf16.msra.mxu0 0
    %100 = vmatprep.subr.bf16.mxu0 0
    %101 = vmatpush1.bf16.msra.mxu0 0
    %102 = vmatprep.mubr.bf16.mxu0 0
    %103 = vmatmul.mubr.bf16.gmra.mrb[0].mxu0 %v65
    %v104 = vpop.f32.mrb[0].mxu0
    %v105 = vadd.f32 %v55, %v104
    %v106 = vpop.f32.mrb[0].mxu0
    %v107 = vpop.f32.mrb[0].mxu0
    %v108 = vadd.f32 %v55, %v107
    %v109 = vpop.f32.mrb[0].mxu0
    %110 = vmatprep.mubr.bf16.mxu0 0
    %111 = vmatmul.mubr.bf16.gmra.mrb[0].mxu0 %v68
    %v112 = vpop.f32.mrb[0].mxu0
    %v113 = vadd.f32 %v55, %v112
    %v114 = vpop.f32.mrb[0].mxu0
    %v115 = vpop.f32.mrb[0].mxu0
    %v116 = vadd.f32 %v55, %v115
    %v117 = vpop.f32.mrb[0].mxu0
    %118 = vdwg.mxu0
    %v119 = vmax.f32 %v105, 0.0
    %v120 = vmax.f32 %v108, 0.0
    %v121 = vmax.f32 %v113, 0.0
    %v122 = vmax.f32 %v116, 0.0
    %v123 = vpack.c.bf16 %v120, %v119
    %v124 = vpack.c.bf16 %v122, %v121
    %v125 = vld [vmem:[#allocation3] sm:$0xf]
    %v126 = vld [vmem:[#allocation3 + $0x4] sm:$0xf]
    %v127 = vld [vmem:[#allocation3 + $0x8] sm:$0xf]
    %v128 = vld [vmem:[#allocation3 + $0xc] sm:$0xf]
    %v129 = vld [vmem:[#allocation3 + $0x10] sm:$0xf]
    %v130 = vld [vmem:[#allocation3 + $0x14] sm:$0xf]
    %v131 = vld [vmem:[#allocation3 + $0x18] sm:$0xf]
    %v132 = vld [vmem:[#allocation3 + $0x1c] sm:$0xf]
    %v133 = vld [vmem:[#allocation3 + $0x20] sm:$0xf]
    %v134 = vld [vmem:[#allocation3 + $0x24] sm:$0xf]
    %v135 = vld [vmem:[#allocation3 + $0x28] sm:$0xf]
    %v136 = vld [vmem:[#allocation3 + $0x2c] sm:$0xf]
    %v137 = vld [vmem:[#allocation3 + $0x30] sm:$0xf]
    %v138 = vld [vmem:[#allocation3 + $0x34] sm:$0xf]
    %v139 = vld [vmem:[#allocation3 + $0x38] sm:$0xf]
    %v140 = vld [vmem:[#allocation3 + $0x3c] sm:$0xf]
    %v141 = vld [vmem:[%s4] sm:$0x1]
    %v143 = vlaneseq
    %v144 = vshrl.u32 %v143, 7
    %v145 = vsub.s32 0, %v144
    %v146 = vrot.slane %v141, %v145
    %v164 = vunpack.c.l.b16 %v125
    %v165 = vunpack.c.l.b16 %v126
    %v166 = vunpack.c.l.b16 %v127
    %v167 = vunpack.c.l.b16 %v128
    %v168 = vunpack.c.l.b16 %v129
    %v169 = vunpack.c.l.b16 %v130
    %v170 = vunpack.c.l.b16 %v131
    %v171 = vunpack.c.l.b16 %v132
    %v172 = vunpack.c.l.b16 %v133
    %v173 = vunpack.c.l.b16 %v134
    %v174 = vunpack.c.l.b16 %v135
    %v175 = vunpack.c.l.b16 %v136
    %v176 = vunpack.c.l.b16 %v137
    %v177 = vunpack.c.l.b16 %v138
    %v178 = vunpack.c.l.b16 %v139
    %v179 = vunpack.c.l.b16 %v140
    %v180 = vpack.c.b16 %v165, %v164
    %v181 = vpack.c.b16 %v167, %v166
    %v182 = vpack.c.b16 %v169, %v168
    %v183 = vpack.c.b16 %v171, %v170
    %v184 = vpack.c.b16 %v173, %v172
    %v185 = vpack.c.b16 %v175, %v174
    %v186 = vpack.c.b16 %v177, %v176
    %v187 = vpack.c.b16 %v179, %v178
    %196 = vmatprep.subr.bf16.mxu0 0
    %197 = vmatpush1.bf16.msra.mxu0 %v180
    %198 = vmatprep.subr.bf16.mxu0 0
    %199 = vmatpush1.bf16.msra.mxu0 %v181
    %200 = vmatprep.subr.bf16.mxu0 0
    %201 = vmatpush1.bf16.msra.mxu0 %v182
    %202 = vmatprep.subr.bf16.mxu0 0
    %203 = vmatpush1.bf16.msra.mxu0 %v183
    %204 = vmatprep.subr.bf16.mxu0 0
    %205 = vmatpush1.bf16.msra.mxu0 %v184
    %206 = vmatprep.subr.bf16.mxu0 0
    %207 = vmatpush1.bf16.msra.mxu0 %v185
    %208 = vmatprep.subr.bf16.mxu0 0
    %209 = vmatpush1.bf16.msra.mxu0 %v186
    %210 = vmatprep.subr.bf16.mxu0 0
    %211 = vmatpush1.bf16.msra.mxu0 %v187
    %212 = vmatprep.subr.bf16.mxu0 0
    %213 = vmatpush1.bf16.msra.mxu0 0
    %214 = vmatprep.subr.bf16.mxu0 0
    %215 = vmatpush1.bf16.msra.mxu0 0
    %216 = vmatprep.subr.bf16.mxu0 0
    %217 = vmatpush1.bf16.msra.mxu0 0
    %218 = vmatprep.subr.bf16.mxu0 0
    %219 = vmatpush1.bf16.msra.mxu0 0
    %220 = vmatprep.subr.bf16.mxu0 0
    %221 = vmatpush1.bf16.msra.mxu0 0
    %222 = vmatprep.subr.bf16.mxu0 0
    %223 = vmatpush1.bf16.msra.mxu0 0
    %224 = vmatprep.subr.bf16.mxu0 0
    %225 = vmatpush1.bf16.msra.mxu0 0
    %226 = vmatprep.subr.bf16.mxu0 0
    %227 = vmatpush1.bf16.msra.mxu0 0
    %228 = vmatprep.mubr.bf16.mxu0 0
    %229 = vmatmul.mubr.bf16.gmra.mrb[0].mxu0 %v123
    %v230 = vpop.f32.mrb[0].mxu0
    %v231 = vadd.f32 %v146, %v230
    %v232 = vpop.f32.mrb[0].mxu0
    %v233 = vpop.f32.mrb[0].mxu0
    %v234 = vadd.f32 %v146, %v233
    %v235 = vpop.f32.mrb[0].mxu0
    %236 = vmatprep.mubr.bf16.mxu0 0
    %237 = vmatmul.mubr.bf16.gmra.mrb[0].mxu0 %v124
    %v238 = vpop.f32.mrb[0].mxu0
    %v239 = vadd.f32 %v146, %v238
    %v240 = vpop.f32.mrb[0].mxu0
    %v241 = vpop.f32.mrb[0].mxu0
    %v242 = vadd.f32 %v146, %v241
    %v243 = vpop.f32.mrb[0].mxu0
    %244 = vdwg.mxu0
    %v245 = vmax.f32 %v231, 0.0
    %v246 = vmax.f32 %v234, 0.0
    %v247 = vmax.f32 %v239, 0.0
    %v248 = vmax.f32 %v242, 0.0
    %v249 = vld [vmem:[%s5] sm:$0x1]
    %v251 = vlaneseq
    %v252 = vshrl.u32 %v251, 7
    %v253 = vsub.s32 0, %v252
    %v254 = vrot.slane %v249, %v253
    %v256 = vmul.f32 %v245, %v254
    %v257 = vmul.f32 %v246, %v254
    %v258 = vmul.f32 %v247, %v254
    %v259 = vmul.f32 %v248, %v254
    %260 = vadd.xlane.f32.xlu0 %v256
    %v261 = vpop.xlane.xlu0 %260
    %262 = vadd.xlane.f32.xlu0 %v257
    %v263 = vpop.xlane.xlu0 %262
    %264 = vadd.xlane.f32.xlu0 %v258
    %v265 = vpop.xlane.xlu0 %264
    %266 = vadd.xlane.f32.xlu0 %v259
    %v267 = vpop.xlane.xlu0 %266
    %s268 = sld [smem:[#allocation2]]
    %v269 = vstv %s268
    %v270 = vadd.f32 %v261, %v269
    %v271 = vadd.f32 %v263, %v269
    %v272 = vadd.f32 %v265, %v269
    %v273 = vadd.f32 %v267, %v269
    %vm274 = vcmask 7168
    %275 = vst.msk [vmem:[%s7] sm:$0xff] %vm274, %v270
    %276 = vst.msk [vmem:[%s7 + $0x8] sm:$0xff] %vm274, %v271
    %277 = vst.msk [vmem:[%s7 + $0x10] sm:$0xff] %vm274, %v272
    %278 = vst.msk [vmem:[%s7 + $0x18] sm:$0xff] %vm274, %v273
    // Predicated region
    $region34: #{tpu_custom_call.1} parent=1 // pred_check
      _
    $region35: #{tpu_custom_call.1} parent=1 // pred_check_branch
      %280 = sbr.rel (0) target = $region37
    $region36: #{tpu_custom_call.1} parent=1 // pred_region
      _
    $region37: #{tpu_custom_call.1} parent=1 // pred_fallthru
      _
    // Predicated region
    $region38: #{tpu_custom_call.1} parent=1 // pred_check
      _
    $region39: #{tpu_custom_call.1} parent=1 // pred_check_branch
      %282 = sbr.rel (0) target = $region41
    $region40: #{tpu_custom_call.1} parent=1 // pred_region
      _
    $region41: #{tpu_custom_call.1} parent=1 // pred_fallthru
      _
    %283 = vsyncpa [#allocation4], 1

</llo_original>
